<compile_context>
chip_gen: v6e
topology: v6e:2x2x1
jax: 0.10.0
libtpu: 0.0.40
codegen_flags: <defaults>
</compile_context>

<pallas_src>
import functools

import jax
import jax.numpy as jnp
from jax.experimental import pallas as pl
from jax.experimental.pallas import tpu as pltpu

# Hidden sizes of the Actor MLP (match the PyTorch module).
H1, H2, H3 = 256, 128, 64

# Largest batch handled by the single fused block; also the per-block row cap
# of the gridded path.  ~3 KB/row of live activations -> ~25 MB at 8192 rows,
# well under the explicit 48 MiB VMEM limit set below on every generation.
TM_MAX = 8192

_MIB = 1024 * 1024


def _cdiv(a, b):
    return -(-a // b)


def _round_up(x, m):
    return ((x + m - 1) // m) * m


def _block_vmem_bytes(rows, state_dim, action_dim):
    """Rough live-VMEM estimate for one `rows`-row block of the fused MLP."""
    f32_per_row = 4 * (state_dim + H1 + H2 + H3 + 3 * action_dim)
    bf16_per_row = 2 * (state_dim + H1 + H2 + H3)
    weights = 2 * (state_dim * H1 + H1 * H2 + H2 * H3 + H3 * action_dim) \
        + 4 * (H1 + H2 + H3)
    return rows * (f32_per_row + bf16_per_row) + weights


def _vmem_limit_bytes(estimate):
    """2x headroom for compiler temporaries, clamped to [32, 48] MiB.

    48 MiB is safe on v7x (64 MiB physical) and trivially so on v5e/v6e
    (128 MiB physical); 32 MiB floor matches the v6e/v7x scoped default and
    lifts v5e's 16 MiB default when a big fused block needs it.
    """
    return int(min(48 * _MIB, max(32 * _MIB, 2 * estimate)))


def _mlp_logits(x_f32, w1_ref, b1_ref, w2_ref, b2_ref, w3_ref, b3_ref, w4_ref):
    """fc1..fc4 with ReLU between; bf16 MXU operands, f32 accumulation.

    fc4 bias intentionally omitted: softmax(dim=0) makes it cancel exactly.
    """
    bf16 = jnp.bfloat16
    h = jnp.dot(x_f32.astype(bf16), w1_ref[...],
                preferred_element_type=jnp.float32)                    # [N, 256]
    h = jnp.maximum(h + b1_ref[...], 0.0)
    h = jnp.dot(h.astype(bf16), w2_ref[...],
                preferred_element_type=jnp.float32)                    # [N, 128]
    h = jnp.maximum(h + b2_ref[...], 0.0)
    h = jnp.dot(h.astype(bf16), w3_ref[...],
                preferred_element_type=jnp.float32)                    # [N, 64]
    h = jnp.maximum(h + b3_ref[...], 0.0)
    return jnp.dot(h.astype(bf16), w4_ref[...],
                   preferred_element_type=jnp.float32)                 # [N, A]


def _batch_softmax(logits, action_lim):
    """softmax over dim=0 (batch axis), exactly as in the PyTorch module."""
    m = jnp.max(logits, axis=0, keepdims=True)                         # [1, A]
    e = jnp.exp(logits - m)                                            # [N, A]
    s = jnp.sum(e, axis=0, keepdims=True)                              # [1, A]
    inv = pl.reciprocal(s, approx=True) * action_lim                   # EUP slot
    return e * inv                                                     # [N, A]


def _actor_fused_kernel(x_ref, w1, b1, w2, b2, w3, b3, w4, out_ref, *,
                        action_lim):
    """Whole forward pass (MLP + batch-axis softmax) in one VMEM block."""
    logits = _mlp_logits(x_ref[...], w1, b1, w2, b2, w3, b3, w4)
    out_ref[...] = _batch_softmax(logits, action_lim)


def _actor_logits_kernel(x_ref, w1, b1, w2, b2, w3, b3, w4, logits_ref):
    """Gridded path: per-batch-block logits (rows are independent)."""
    logits_ref[...] = _mlp_logits(x_ref[...], w1, b1, w2, b2, w3, b3, w4)


def actor_forward(state, params, action_lim, *, force_grid_tm=None):
    """state: [N, state_dim] f32. params: dict of (w, b), w stored as [in, out].

    Returns softmax(fc4(relu(fc3(relu(fc2(relu(fc1(state)))))))  , dim=0)
    * action_lim, shape [N, action_dim], f32.
    """
    n, state_dim = state.shape
    w1, b1 = params["fc1"]
    w2, b2 = params["fc2"]
    w3, b3 = params["fc3"]
    w4, _b4 = params["fc4"]          # fc4 bias cancels in the dim=0 softmax
    action_dim = w4.shape[1]
    action_lim = float(action_lim)

    # bf16 MXU operands; biases & VPU/EUP math stay f32.
    wb = [w.astype(jnp.bfloat16) for w in (w1, w2, w3, w4)]
    args = (state, wb[0], b1, wb[1], b2, wb[2], b3, wb[3])

    vmem = pl.BlockSpec(memory_space=pltpu.MemorySpace.VMEM)

    if force_grid_tm is None and n <= TM_MAX:
        # Fused single-block path: everything resident in VMEM, softmax fused,
        # single kernel launch, no logits HBM round-trip.
        limit = _vmem_limit_bytes(_block_vmem_bytes(n, state_dim, action_dim))
        return pl.pallas_call(
            functools.partial(_actor_fused_kernel, action_lim=action_lim),
            out_shape=jax.ShapeDtypeStruct((n, action_dim), jnp.float32),
            in_specs=[vmem] * 8,
            out_specs=vmem,
            compiler_params=pltpu.CompilerParams(vmem_limit_bytes=limit),
        )(*args)

    # Gridded path (VMEM forces a split): use the FEWEST balanced batch blocks
    # that fit the budget -> minimum serial steps on 1-TC v5e/v6e, and exactly
    # one block per core just past the threshold on 2-TC v7x ("parallel").
    if force_grid_tm is not None:
        tm = int(force_grid_tm)          # test hook; must be a multiple of 8
    else:
        num_blocks = _cdiv(n, TM_MAX)
        tm = _round_up(_cdiv(n, num_blocks), 128)
    grid = (_cdiv(n, tm),)

    limit = _vmem_limit_bytes(
        _block_vmem_bytes(tm, state_dim, action_dim)
        + 4 * tm * (state_dim + action_dim))          # double-buffered I/O blocks
    flops = 2 * n * (state_dim * H1 + H1 * H2 + H2 * H3 + H3 * action_dim)
    bytes_accessed = (state.size * 4 + sum(int(w.size) * 2 for w in wb)
                      + (b1.size + b2.size + b3.size) * 4
                      + n * action_dim * 4)

    logits = pl.pallas_call(
        _actor_logits_kernel,
        out_shape=jax.ShapeDtypeStruct((n, action_dim), jnp.float32),
        grid=grid,
        in_specs=[
            pl.BlockSpec((tm, state_dim), lambda i: (i, 0)),
            pl.BlockSpec((state_dim, H1), lambda i: (0, 0)),
            pl.BlockSpec((1, H1), lambda i: (0, 0)),
            pl.BlockSpec((H1, H2), lambda i: (0, 0)),
            pl.BlockSpec((1, H2), lambda i: (0, 0)),
            pl.BlockSpec((H2, H3), lambda i: (0, 0)),
            pl.BlockSpec((1, H3), lambda i: (0, 0)),
            pl.BlockSpec((H3, action_dim), lambda i: (0, 0)),
        ],
        out_specs=pl.BlockSpec((tm, action_dim), lambda i: (i, 0)),
        compiler_params=pltpu.CompilerParams(
            dimension_semantics=("parallel",), vmem_limit_bytes=limit),
        cost_estimate=pl.CostEstimate(
            flops=flops, transcendentals=0, bytes_accessed=int(bytes_accessed)),
    )(*args)

    # Batch-axis softmax couples every block; do it as plain jnp on the tiny
    # [N, A] logits (bounded for any n, no extra kernel launch).
    return jax.nn.softmax(logits, axis=0) * action_lim


def init_actor_params(key, state_dim, action_dim):
    """Deterministic init mirroring the PyTorch module's shapes.

    fc{1,2,3}: fanin_init -> U(-1/sqrt(fan_in), 1/sqrt(fan_in)) on the weights.
    fc4:       U(-EPS, EPS).
    Biases use PyTorch's default Linear bias init U(-1/sqrt(fan_in), 1/sqrt(fan_in)).
    Weights are stored pre-transposed as [in, out], f32.
    """
    EPS = 0.003
    dims = [(state_dim, H1), (H1, H2), (H2, H3), (H3, action_dim)]
    names = ["fc1", "fc2", "fc3", "fc4"]
    params = {}
    keys = jax.random.split(key, 8)
    for i, (name, (din, dout)) in enumerate(zip(names, dims)):
        bound = EPS if name == "fc4" else 1.0 / jnp.sqrt(float(din))
        w = jax.random.uniform(keys[2 * i], (din, dout), jnp.float32,
                               minval=-bound, maxval=bound)
        b_bound = 1.0 / jnp.sqrt(float(din))
        b = jax.random.uniform(keys[2 * i + 1], (1, dout), jnp.float32,
                               minval=-b_bound, maxval=b_bound)
        params[name] = (w, b)
    return params


if __name__ == "__main__":
    state_dim = 32
    action_dim = 8
    action_lim = 2.0

    key = jax.random.PRNGKey(0)
    k_params, k_state, k_grid = jax.random.split(key, 3)
    params = init_actor_params(k_params, state_dim, action_dim)

    def ref_forward(x, cast_bf16=True):
        """Pure-JAX reference; keeps the fc4 bias (verifies that dropping it in
        the kernel is exact under the dim=0 softmax)."""
        bf16 = jnp.bfloat16
        h = x
        for name in ("fc1", "fc2", "fc3"):
            w, b = params[name]
            if cast_bf16:
                h = jnp.dot(h.astype(bf16), w.astype(bf16),
                            preferred_element_type=jnp.float32) + b
            else:
                h = jnp.dot(h, w) + b
            h = jnp.maximum(h, 0.0)
        w, b = params["fc4"]
        if cast_bf16:
            logits = jnp.dot(h.astype(bf16), w.astype(bf16),
                             preferred_element_type=jnp.float32) + b
        else:
            logits = jnp.dot(h, w) + b
        return jax.nn.softmax(logits, axis=0) * action_lim

    # --- Small batch: fused single-block kernel (MLP + softmax in one launch).
    batch = 4
    state = jax.random.normal(k_state, (batch, state_dim), jnp.float32)
    action = jax.block_until_ready(actor_forward(state, params, action_lim))
    assert action.shape == (batch, action_dim)
    assert jnp.allclose(action, ref_forward(state), atol=1e-2, rtol=1e-2)
    # Loose check vs. the true f32 reference (bf16 MXU operands are deliberate).
    assert jnp.allclose(action, ref_forward(state, cast_bf16=False),
                        atol=5e-2, rtol=5e-2)
    # Each output column sums to ~action_lim (approx-reciprocal softmax).
    assert jnp.allclose(action.sum(axis=0), action_lim, atol=2e-2)

    # --- Non-multiple batch forced through the gridded path (exercises the
    # partial last block's masked writeback and the cross-block batch softmax).
    n_grid = 100
    state_g = jax.random.normal(k_grid, (n_grid, state_dim), jnp.float32)
    action_g = jax.block_until_ready(
        actor_forward(state_g, params, action_lim, force_grid_tm=32))
    assert action_g.shape == (n_grid, action_dim)
    assert jnp.allclose(action_g, ref_forward(state_g), atol=1e-2, rtol=1e-2)

    print("KERNEL_OK")
</pallas_src>

<mosaic_0001>
module attributes {stable_mosaic.version = 11 : i64} {
  func.func @_actor_fused_kernel(%arg0: memref<4x32xf32, #tpu.memory_space<vmem>>, %arg1: memref<32x256xbf16, #tpu.memory_space<vmem>>, %arg2: memref<1x256xf32, #tpu.memory_space<vmem>>, %arg3: memref<256x128xbf16, #tpu.memory_space<vmem>>, %arg4: memref<1x128xf32, #tpu.memory_space<vmem>>, %arg5: memref<128x64xbf16, #tpu.memory_space<vmem>>, %arg6: memref<1x64xf32, #tpu.memory_space<vmem>>, %arg7: memref<64x8xbf16, #tpu.memory_space<vmem>>, %arg8: memref<4x8xf32, #tpu.memory_space<vmem>>) attributes {dimension_semantics = [], scalar_prefetch = 0 : i64, scratch_operands = 0 : i64, tpu.core_type = #tpu.core_type<tc>} {
    %c0 = arith.constant 0 : index
    %c0_0 = arith.constant 0 : index
    %0 = vector.load %arg0[%c0, %c0_0] : memref<4x32xf32, #tpu.memory_space<vmem>>, vector<4x32xf32>
    %1 = arith.truncf %0 : vector<4x32xf32> to vector<4x32xbf16>
    %c0_1 = arith.constant 0 : index
    %c0_2 = arith.constant 0 : index
    %2 = vector.load %arg1[%c0_1, %c0_2] : memref<32x256xbf16, #tpu.memory_space<vmem>>, vector<32x256xbf16>
    %cst = arith.constant dense<0.000000e+00> : vector<4x256xf32>
    %3 = tpu.matmul %1, %2, %cst {dimension_numbers = #tpu.dot_dimension_numbers<[1], [0], [0], [1], [0, 0, 1, 1], [], []>} : vector<4x32xbf16>, vector<32x256xbf16>, vector<4x256xf32> -> vector<4x256xf32>
    %c0_3 = arith.constant 0 : index
    %c0_4 = arith.constant 0 : index
    %4 = vector.load %arg2[%c0_3, %c0_4] : memref<1x256xf32, #tpu.memory_space<vmem>>, vector<1x256xf32>
    %5 = vector.broadcast %4 : vector<1x256xf32> to vector<4x256xf32>
    %6 = arith.addf %3, %5 : vector<4x256xf32>
    %cst_5 = arith.constant 0.000000e+00 : f32
    %7 = vector.broadcast %cst_5 : f32 to vector<4x256xf32>
    %8 = arith.maximumf %6, %7 : vector<4x256xf32>
    %9 = arith.truncf %8 : vector<4x256xf32> to vector<4x256xbf16>
    %c0_6 = arith.constant 0 : index
    %c0_7 = arith.constant 0 : index
    %10 = vector.load %arg3[%c0_6, %c0_7] : memref<256x128xbf16, #tpu.memory_space<vmem>>, vector<256x128xbf16>
    %cst_8 = arith.constant dense<0.000000e+00> : vector<4x128xf32>
    %11 = tpu.matmul %9, %10, %cst_8 {dimension_numbers = #tpu.dot_dimension_numbers<[1], [0], [0], [1], [0, 0, 1, 1], [], []>} : vector<4x256xbf16>, vector<256x128xbf16>, vector<4x128xf32> -> vector<4x128xf32>
    %c0_9 = arith.constant 0 : index
    %c0_10 = arith.constant 0 : index
    %12 = vector.load %arg4[%c0_9, %c0_10] : memref<1x128xf32, #tpu.memory_space<vmem>>, vector<1x128xf32>
    %13 = vector.broadcast %12 : vector<1x128xf32> to vector<4x128xf32>
    %14 = arith.addf %11, %13 : vector<4x128xf32>
    %cst_11 = arith.constant 0.000000e+00 : f32
    %15 = vector.broadcast %cst_11 : f32 to vector<4x128xf32>
    %16 = arith.maximumf %14, %15 : vector<4x128xf32>
    %17 = arith.truncf %16 : vector<4x128xf32> to vector<4x128xbf16>
    %c0_12 = arith.constant 0 : index
    %c0_13 = arith.constant 0 : index
    %18 = vector.load %arg5[%c0_12, %c0_13] : memref<128x64xbf16, #tpu.memory_space<vmem>>, vector<128x64xbf16>
    %cst_14 = arith.constant dense<0.000000e+00> : vector<4x64xf32>
    %19 = tpu.matmul %17, %18, %cst_14 {dimension_numbers = #tpu.dot_dimension_numbers<[1], [0], [0], [1], [0, 0, 1, 1], [], []>} : vector<4x128xbf16>, vector<128x64xbf16>, vector<4x64xf32> -> vector<4x64xf32>
    %c0_15 = arith.constant 0 : index
    %c0_16 = arith.constant 0 : index
    %20 = vector.load %arg6[%c0_15, %c0_16] : memref<1x64xf32, #tpu.memory_space<vmem>>, vector<1x64xf32>
    %21 = vector.broadcast %20 : vector<1x64xf32> to vector<4x64xf32>
    %22 = arith.addf %19, %21 : vector<4x64xf32>
    %cst_17 = arith.constant 0.000000e+00 : f32
    %23 = vector.broadcast %cst_17 : f32 to vector<4x64xf32>
    %24 = arith.maximumf %22, %23 : vector<4x64xf32>
    %25 = arith.truncf %24 : vector<4x64xf32> to vector<4x64xbf16>
    %c0_18 = arith.constant 0 : index
    %c0_19 = arith.constant 0 : index
    %26 = vector.load %arg7[%c0_18, %c0_19] : memref<64x8xbf16, #tpu.memory_space<vmem>>, vector<64x8xbf16>
    %cst_20 = arith.constant dense<0.000000e+00> : vector<4x8xf32>
    %27 = tpu.matmul %25, %26, %cst_20 {dimension_numbers = #tpu.dot_dimension_numbers<[1], [0], [0], [1], [0, 0, 1, 1], [], []>} : vector<4x64xbf16>, vector<64x8xbf16>, vector<4x8xf32> -> vector<4x8xf32>
    %cst_21 = arith.constant dense<0xFF800000> : vector<8xf32>
    %28 = vector.multi_reduction <maximumf>, %27, %cst_21 [0] : vector<4x8xf32> to vector<8xf32>
    %29 = vector.shape_cast %28 : vector<8xf32> to vector<1x8xf32>
    %30 = vector.broadcast %29 : vector<1x8xf32> to vector<4x8xf32>
    %31 = arith.subf %27, %30 : vector<4x8xf32>
    %32 = math.exp %31 : vector<4x8xf32>
    %cst_22 = arith.constant dense<0.000000e+00> : vector<8xf32>
    %33 = vector.multi_reduction <add>, %32, %cst_22 [0] : vector<4x8xf32> to vector<8xf32>
    %34 = vector.shape_cast %33 : vector<8xf32> to vector<1x8xf32>
    %35 = tpu.reciprocal %34 {approx = true} : vector<1x8xf32> -> vector<1x8xf32>
    %cst_23 = arith.constant 2.000000e+00 : f32
    %36 = vector.broadcast %cst_23 : f32 to vector<1x8xf32>
    %37 = arith.mulf %35, %36 : vector<1x8xf32>
    %38 = vector.broadcast %37 : vector<1x8xf32> to vector<4x8xf32>
    %39 = arith.mulf %32, %38 : vector<4x8xf32>
    %c0_24 = arith.constant 0 : index
    %c0_25 = arith.constant 0 : index
    %40 = vector.load %arg8[%c0_24, %c0_25] : memref<4x8xf32, #tpu.memory_space<vmem>>, vector<4x8xf32>
    tpu.vector_store %arg8[%c0_24, %c0_25], %39 {strides = array<i32>} : memref<4x8xf32, #tpu.memory_space<vmem>>, vector<4x8xf32>,
    return
  }
}

</mosaic_0001>

<llo_original>
// kernel: tpu_custom_call.1
$region0: #{tpu_custom_call.1}
  #allocation0 [shape = 'u32[]', space=smem, size = 0x4, offset = 0x4, fixed_abs, tag = 'smem constant byte address 0x4 - core index']
  #allocation1 [shape = 'u32[144,128]{1,0:T(1,128)}', space=vmem, size = 0x12000, scoped, tag = 'internal scratch']
  %s0 = inlined_call_operand.vmem [shape: f32[4,32], index: 0, kind: input, shape index: {}]
  %s1 = inlined_call_operand.hbm [shape: bf16[32,256], index: 1, kind: input, shape index: {}]
  %s2 = inlined_call_operand.vmem [shape: f32[1,256], index: 2, kind: input, shape index: {}]
  %s3 = inlined_call_operand.vmem [shape: bf16[256,128], index: 3, kind: input, shape index: {}]
  %s4 = inlined_call_operand.vmem [shape: f32[1,128], index: 4, kind: input, shape index: {}]
  %s5 = inlined_call_operand.vmem [shape: bf16[128,64], index: 5, kind: input, shape index: {}]
  %s6 = inlined_call_operand.vmem [shape: f32[1,64], index: 6, kind: input, shape index: {}]
  %s7 = inlined_call_operand.vmem [shape: bf16[64,8], index: 7, kind: input, shape index: {}]
  %s8 = inlined_call_operand.hbm [shape: f32[4,8], index: 8, kind: output, shape index: {}]
  %s9 = sld [smem:[#allocation0]]
  $region46: #{tpu_custom_call.1} parent=0
    _
  %s11 = ssub.s32 1, %s9
  %s12 = scalar_select 0, %s11, %s9
  $region1: #{tpu_custom_call.1} parent=0
    #allocation2 [shape = 'u8[16384]{0}', space=vmem, size = 0x4000, scoped, tag = 'input window, operand 1, single buffered']
    #allocation3 [shape = 's32[1]{0}', space=sflag, size = 0x4, scoped, tag = 'scoped memory for tpu_custom_call.1']
    #allocation4 [shape = 's32[1]{0}', space=sflag, size = 0x4, scoped, tag = 'scoped memory for tpu_custom_call.1']
    #allocation5 [shape = 'u8[2048]{0}', space=vmem, size = 0x800, scoped, tag = 'output window, operand 0, single buffered']
    %13 = vsyncpa [#allocation3], 0
    %14 = vsyncpa [#allocation4], 0
    // Predicated region
    $region2: #{tpu_custom_call.1} parent=1 // pred_check
      _
    $region3: #{tpu_custom_call.1} parent=1 // pred_check_branch
      %16 = sbr.rel (0) target = $region5
    $region4: #{tpu_custom_call.1} parent=1 // pred_region
      _
    $region5: #{tpu_custom_call.1} parent=1 // pred_fallthru
      _
    // Predicated region
    $region6: #{tpu_custom_call.1} parent=1 // pred_check
      _
    $region7: #{tpu_custom_call.1} parent=1 // pred_check_branch
      %18 = sbr.rel (0) target = $region9
    $region8: #{tpu_custom_call.1} parent=1 // pred_region
      %s20 = ssub.s32 512, 512
      %21 = vsyncadd [#allocation3], %s20
      %s22 = sshll.u32 [#allocation2], 4
      %s23 = int_to_ptr.vmem [resolvable:$true] %s22
      %28 = dma.hbm_to_vmem [thread:$0]  %s1, 512, %s23, [#allocation3], 128, 128, 8
    $region9: #{tpu_custom_call.1} parent=1 // pred_fallthru
      _
    // Predicated region
    $region10: #{tpu_custom_call.1} parent=1 // pred_check
      _
    $region11: #{tpu_custom_call.1} parent=1 // pred_check_branch
      %30 = sbr.rel (0) target = $region13
    $region12: #{tpu_custom_call.1} parent=1 // pred_region
      _
    $region13: #{tpu_custom_call.1} parent=1 // pred_fallthru
      _
    // Predicated region
    $region14: #{tpu_custom_call.1} parent=1 // pred_check
      _
    $region15: #{tpu_custom_call.1} parent=1 // pred_check_branch
      %32 = sbr.rel (0) target = $region17
    $region16: #{tpu_custom_call.1} parent=1 // pred_region
      _
    $region17: #{tpu_custom_call.1} parent=1 // pred_fallthru
      _
    // Predicated region
    $region18: #{tpu_custom_call.1} parent=1 // pred_check
      _
    $region19: #{tpu_custom_call.1} parent=1 // pred_check_branch
      %34 = sbr.rel (0) target = $region21
    $region20: #{tpu_custom_call.1} parent=1 // pred_region
      _
    $region21: #{tpu_custom_call.1} parent=1 // pred_fallthru
      _
    // Predicated region
    $region22: #{tpu_custom_call.1} parent=1 // pred_check
      _
    $region23: #{tpu_custom_call.1} parent=1 // pred_check_branch
      %36 = sbr.rel (0) target = $region25
    $region24: #{tpu_custom_call.1} parent=1 // pred_region
      _
    $region25: #{tpu_custom_call.1} parent=1 // pred_fallthru
      _
    // Predicated region
    $region26: #{tpu_custom_call.1} parent=1 // pred_check
      _
    $region27: #{tpu_custom_call.1} parent=1 // pred_check_branch
      %38 = sbr.rel (0) target = $region29
    $region28: #{tpu_custom_call.1} parent=1 // pred_region
      _
    $region29: #{tpu_custom_call.1} parent=1 // pred_fallthru
      _
    // Predicated region
    $region30: #{tpu_custom_call.1} parent=1 // pred_check
      _
    $region31: #{tpu_custom_call.1} parent=1 // pred_check_branch
      %40 = sbr.rel (0) target = $region33
    $region32: #{tpu_custom_call.1} parent=1 // pred_region
      _
    $region33: #{tpu_custom_call.1} parent=1 // pred_fallthru
      _
    // Predicated region
    $region34: #{tpu_custom_call.1} parent=1 // pred_check
      _
    $region35: #{tpu_custom_call.1} parent=1 // pred_check_branch
      %42 = sbr.rel (0) target = $region37
    $region36: #{tpu_custom_call.1} parent=1 // pred_region
      %43 = dma.done [#allocation3], 512
    $region37: #{tpu_custom_call.1} parent=1 // pred_fallthru
      _
    %v45 = vld [vmem:[%s0] sm:$0xf]
    %v46 = vpack.c.bf16 %v45, %v45
    %v47 = vld [vmem:[#allocation2] sm:$0xff]
    %v48 = vld [vmem:[#allocation2 + $0x8] sm:$0xff]
    %v49 = vld [vmem:[#allocation2 + $0x10] sm:$0xff]
    %v50 = vld [vmem:[#allocation2 + $0x18] sm:$0xff]
    %v51 = vld [vmem:[%s2] sm:$0x3]
    %v53 = vlaneseq
    %v54 = vshrl.u32 %v53, 7
    %v55 = vsub.s32 0, %v54
    %v56 = vrot.slane %v51, %v55
    %v57 = vlaneseq
    %v58 = vshrl.u32 %v57, 7
    %v59 = vsub.s32 1, %v58
    %v60 = vrot.slane %v51, %v59
    %v67 = vunpack.c.l.b16 %v47
    %v68 = vunpack.c.h.b16 %v47
    %v69 = vunpack.c.l.b16 %v48
    %v70 = vunpack.c.h.b16 %v48
    %v71 = vunpack.c.l.b16 %v49
    %v72 = vunpack.c.h.b16 %v49
    %v73 = vunpack.c.l.b16 %v50
    %v74 = vunpack.c.h.b16 %v50
    %v75 = vpack.c.b16 %v69, %v67
    %v76 = vpack.c.b16 %v70, %v68
    %v77 = vpack.c.b16 %v73, %v71
    %v78 = vpack.c.b16 %v74, %v72
    %vm83 = vcmask 261120
    %v85 = vsel %vm83, %v46, 0
    %87 = vmatprep.subr.bf16.mxu0 0
    %88 = vmatpush1.bf16.msra.mxu0 0
    %89 = vmatprep.subr.bf16.mxu0 0
    %90 = vmatpush1.bf16.msra.mxu0 0
    %91 = vmatprep.subr.bf16.mxu0 0
    %92 = vmatpush1.bf16.msra.mxu0 0
    %93 = vmatprep.subr.bf16.mxu0 0
    %94 = vmatpush1.bf16.msra.mxu0 0
    %95 = vmatprep.subr.bf16.mxu0 0
    %96 = vmatpush1.bf16.msra.mxu0 0
    %97 = vmatprep.subr.bf16.mxu0 0
    %98 = vmatpush1.bf16.msra.mxu0 0
    %99 = vmatprep.subr.bf16.mxu0 %v78
    %100 = vmatpush1.bf16.msra.mxu0 %v77
    %101 = vmatprep.subr.bf16.mxu0 %v76
    %102 = vmatpush1.bf16.msra.mxu0 %v75
    %103 = vmatprep.subr.bf16.mxu0 0
    %104 = vmatpush2.bf16.msra.mxu0 0
    %105 = vmatprep.subr.bf16.mxu0 0
    %106 = vmatpush2.bf16.msra.mxu0 0
    %107 = vmatprep.subr.bf16.mxu0 0
    %108 = vmatpush2.bf16.msra.mxu0 0
    %109 = vmatprep.subr.bf16.mxu0 0
    %110 = vmatpush2.bf16.msra.mxu0 0
    %111 = vmatprep.subr.bf16.mxu0 0
    %112 = vmatpush2.bf16.msra.mxu0 0
    %113 = vmatprep.subr.bf16.mxu0 0
    %114 = vmatpush2.bf16.msra.mxu0 0
    %115 = vmatprep.subr.bf16.mxu0 0
    %116 = vmatpush2.bf16.msra.mxu0 0
    %117 = vmatprep.subr.bf16.mxu0 0
    %118 = vmatpush2.bf16.msra.mxu0 0
    %119 = vmatprep.mubr.bf16.mxu0 0
    %120 = vmatmul.mubr.bf16.gmra.mxu0 %v85
    %v121 = vpop.f32.mrf.mxu0
    %v122 = vadd.f32 %v56, %v121
    %v123 = vpop.f32.mrf.mxu0
    %v124 = vadd.f32 %v60, %v123
    %v125 = vpop.f32.mrf.mxu0
    %v126 = vpop.f32.mrf.mxu0
    %127 = vdwg.mxu0
    %v128 = vmax.f32 %v122, 0.0
    %v129 = vmax.f32 %v124, 0.0
    %v130 = vpack.c.bf16 %v128, %v128
    %v131 = vpack.c.bf16 %v129, %v129
    %v132 = vld [vmem:[%s3] sm:$0xf]
    %v133 = vld [vmem:[%s3 + $0x4] sm:$0xf]
    %v134 = vld [vmem:[%s3 + $0x8] sm:$0xf]
    %v135 = vld [vmem:[%s3 + $0xc] sm:$0xf]
    %v136 = vld [vmem:[%s3 + $0x10] sm:$0xf]
    %v137 = vld [vmem:[%s3 + $0x14] sm:$0xf]
    %v138 = vld [vmem:[%s3 + $0x18] sm:$0xf]
    %v139 = vld [vmem:[%s3 + $0x1c] sm:$0xf]
    %v140 = vld [vmem:[%s3 + $0x20] sm:$0xf]
    %v141 = vld [vmem:[%s3 + $0x24] sm:$0xf]
    %v142 = vld [vmem:[%s3 + $0x28] sm:$0xf]
    %v143 = vld [vmem:[%s3 + $0x2c] sm:$0xf]
    %v144 = vld [vmem:[%s3 + $0x30] sm:$0xf]
    %v145 = vld [vmem:[%s3 + $0x34] sm:$0xf]
    %v146 = vld [vmem:[%s3 + $0x38] sm:$0xf]
    %v147 = vld [vmem:[%s3 + $0x3c] sm:$0xf]
    %v148 = vld [vmem:[%s3 + $0x40] sm:$0xf]
    %v149 = vld [vmem:[%s3 + $0x44] sm:$0xf]
    %v150 = vld [vmem:[%s3 + $0x48] sm:$0xf]
    %v151 = vld [vmem:[%s3 + $0x4c] sm:$0xf]
    %v152 = vld [vmem:[%s3 + $0x50] sm:$0xf]
    %v153 = vld [vmem:[%s3 + $0x54] sm:$0xf]
    %v154 = vld [vmem:[%s3 + $0x58] sm:$0xf]
    %v155 = vld [vmem:[%s3 + $0x5c] sm:$0xf]
    %v156 = vld [vmem:[%s3 + $0x60] sm:$0xf]
    %v157 = vld [vmem:[%s3 + $0x64] sm:$0xf]
    %v158 = vld [vmem:[%s3 + $0x68] sm:$0xf]
    %v159 = vld [vmem:[%s3 + $0x6c] sm:$0xf]
    %v160 = vld [vmem:[%s3 + $0x70] sm:$0xf]
    %v161 = vld [vmem:[%s3 + $0x74] sm:$0xf]
    %v162 = vld [vmem:[%s3 + $0x78] sm:$0xf]
    %v163 = vld [vmem:[%s3 + $0x7c] sm:$0xf]
    %v164 = vld [vmem:[%s4] sm:$0x1]
    %v166 = vlaneseq
    %v167 = vshrl.u32 %v166, 7
    %v168 = vsub.s32 0, %v167
    %v169 = vrot.slane %v164, %v168
    %v203 = vunpack.c.l.b16 %v132
    %v204 = vunpack.c.l.b16 %v133
    %v205 = vunpack.c.l.b16 %v134
    %v206 = vunpack.c.l.b16 %v135
    %v207 = vunpack.c.l.b16 %v136
    %v208 = vunpack.c.l.b16 %v137
    %v209 = vunpack.c.l.b16 %v138
    %v210 = vunpack.c.l.b16 %v139
    %v211 = vunpack.c.l.b16 %v140
    %v212 = vunpack.c.l.b16 %v141
    %v213 = vunpack.c.l.b16 %v142
    %v214 = vunpack.c.l.b16 %v143
    %v215 = vunpack.c.l.b16 %v144
    %v216 = vunpack.c.l.b16 %v145
    %v217 = vunpack.c.l.b16 %v146
    %v218 = vunpack.c.l.b16 %v147
    %v219 = vunpack.c.l.b16 %v148
    %v220 = vunpack.c.l.b16 %v149
    %v221 = vunpack.c.l.b16 %v150
    %v222 = vunpack.c.l.b16 %v151
    %v223 = vunpack.c.l.b16 %v152
    %v224 = vunpack.c.l.b16 %v153
    %v225 = vunpack.c.l.b16 %v154
    %v226 = vunpack.c.l.b16 %v155
    %v227 = vunpack.c.l.b16 %v156
    %v228 = vunpack.c.l.b16 %v157
    %v229 = vunpack.c.l.b16 %v158
    %v230 = vunpack.c.l.b16 %v159
    %v231 = vunpack.c.l.b16 %v160
    %v232 = vunpack.c.l.b16 %v161
    %v233 = vunpack.c.l.b16 %v162
    %v234 = vunpack.c.l.b16 %v163
    %v235 = vpack.c.b16 %v204, %v203
    %v236 = vpack.c.b16 %v206, %v205
    %v237 = vpack.c.b16 %v208, %v207
    %v238 = vpack.c.b16 %v210, %v209
    %v239 = vpack.c.b16 %v212, %v211
    %v240 = vpack.c.b16 %v214, %v213
    %v241 = vpack.c.b16 %v216, %v215
    %v242 = vpack.c.b16 %v218, %v217
    %v243 = vpack.c.b16 %v220, %v219
    %v244 = vpack.c.b16 %v222, %v221
    %v245 = vpack.c.b16 %v224, %v223
    %v246 = vpack.c.b16 %v226, %v225
    %v247 = vpack.c.b16 %v228, %v227
    %v248 = vpack.c.b16 %v230, %v229
    %v249 = vpack.c.b16 %v232, %v231
    %v250 = vpack.c.b16 %v234, %v233
    %267 = vmatprep.subr.bf16.mxu0 0
    %268 = vmatpush1.bf16.msra.mxu0 %v242
    %269 = vmatprep.subr.bf16.mxu0 0
    %270 = vmatpush1.bf16.msra.mxu0 %v241
    %271 = vmatprep.subr.bf16.mxu0 0
    %272 = vmatpush1.bf16.msra.mxu0 %v240
    %273 = vmatprep.subr.bf16.mxu0 0
    %274 = vmatpush1.bf16.msra.mxu0 %v239
    %275 = vmatprep.subr.bf16.mxu0 0
    %276 = vmatpush1.bf16.msra.mxu0 %v238
    %277 = vmatprep.subr.bf16.mxu0 0
    %278 = vmatpush1.bf16.msra.mxu0 %v237
    %279 = vmatprep.subr.bf16.mxu0 0
    %280 = vmatpush1.bf16.msra.mxu0 %v236
    %281 = vmatprep.subr.bf16.mxu0 0
    %282 = vmatpush1.bf16.msra.mxu0 %v235
    %283 = vmatprep.subr.bf16.mxu0 0
    %284 = vmatpush2.bf16.msra.mxu0 %v250
    %285 = vmatprep.subr.bf16.mxu0 0
    %286 = vmatpush2.bf16.msra.mxu0 %v249
    %287 = vmatprep.subr.bf16.mxu0 0
    %288 = vmatpush2.bf16.msra.mxu0 %v248
    %289 = vmatprep.subr.bf16.mxu0 0
    %290 = vmatpush2.bf16.msra.mxu0 %v247
    %291 = vmatprep.subr.bf16.mxu0 0
    %292 = vmatpush2.bf16.msra.mxu0 %v246
    %293 = vmatprep.subr.bf16.mxu0 0
    %294 = vmatpush2.bf16.msra.mxu0 %v245
    %295 = vmatprep.subr.bf16.mxu0 0
    %296 = vmatpush2.bf16.msra.mxu0 %v244
    %297 = vmatprep.subr.bf16.mxu0 0
    %298 = vmatpush2.bf16.msra.mxu0 %v243
    %299 = vmatprep.mubr.bf16.mxu0 %v131
    %300 = vmatmul.mubr.bf16.gmra.mxu0 %v130
    %v301 = vpop.f32.mrf.mxu0
    %v302 = vadd.f32 %v169, %v301
    %v303 = vpop.f32.mrf.mxu0
    %v304 = vpop.f32.mrf.mxu0
    %v305 = vpop.f32.mrf.mxu0
    %306 = vdwg.mxu0
    %v307 = vmax.f32 %v302, 0.0
    %v308 = vpack.c.bf16 %v307, %v307
    %v309 = vld [vmem:[%s5] sm:$0xf]
    %v310 = vld [vmem:[%s5 + $0x4] sm:$0xf]
    %v311 = vld [vmem:[%s5 + $0x8] sm:$0xf]
    %v312 = vld [vmem:[%s5 + $0xc] sm:$0xf]
    %v313 = vld [vmem:[%s5 + $0x10] sm:$0xf]
    %v314 = vld [vmem:[%s5 + $0x14] sm:$0xf]
    %v315 = vld [vmem:[%s5 + $0x18] sm:$0xf]
    %v316 = vld [vmem:[%s5 + $0x1c] sm:$0xf]
    %v317 = vld [vmem:[%s5 + $0x20] sm:$0xf]
    %v318 = vld [vmem:[%s5 + $0x24] sm:$0xf]
    %v319 = vld [vmem:[%s5 + $0x28] sm:$0xf]
    %v320 = vld [vmem:[%s5 + $0x2c] sm:$0xf]
    %v321 = vld [vmem:[%s5 + $0x30] sm:$0xf]
    %v322 = vld [vmem:[%s5 + $0x34] sm:$0xf]
    %v323 = vld [vmem:[%s5 + $0x38] sm:$0xf]
    %v324 = vld [vmem:[%s5 + $0x3c] sm:$0xf]
    %v325 = vld [vmem:[%s6] sm:$0x1]
    %v327 = vlaneseq
    %v328 = vshrl.u32 %v327, 7
    %v329 = vsub.s32 0, %v328
    %v330 = vrot.slane %v325, %v329
    %v348 = vunpack.c.l.b16 %v309
    %v349 = vunpack.c.l.b16 %v310
    %v350 = vunpack.c.l.b16 %v311
    %v351 = vunpack.c.l.b16 %v312
    %v352 = vunpack.c.l.b16 %v313
    %v353 = vunpack.c.l.b16 %v314
    %v354 = vunpack.c.l.b16 %v315
    %v355 = vunpack.c.l.b16 %v316
    %v356 = vunpack.c.l.b16 %v317
    %v357 = vunpack.c.l.b16 %v318
    %v358 = vunpack.c.l.b16 %v319
    %v359 = vunpack.c.l.b16 %v320
    %v360 = vunpack.c.l.b16 %v321
    %v361 = vunpack.c.l.b16 %v322
    %v362 = vunpack.c.l.b16 %v323
    %v363 = vunpack.c.l.b16 %v324
    %v364 = vpack.c.b16 %v349, %v348
    %v365 = vpack.c.b16 %v351, %v350
    %v366 = vpack.c.b16 %v353, %v352
    %v367 = vpack.c.b16 %v355, %v354
    %v368 = vpack.c.b16 %v357, %v356
    %v369 = vpack.c.b16 %v359, %v358
    %v370 = vpack.c.b16 %v361, %v360
    %v371 = vpack.c.b16 %v363, %v362
    %380 = vmatprep.subr.bf16.mxu0 0
    %381 = vmatpush1.bf16.msra.mxu0 %v371
    %382 = vmatprep.subr.bf16.mxu0 0
    %383 = vmatpush1.bf16.msra.mxu0 %v370
    %384 = vmatprep.subr.bf16.mxu0 0
    %385 = vmatpush1.bf16.msra.mxu0 %v369
    %386 = vmatprep.subr.bf16.mxu0 0
    %387 = vmatpush1.bf16.msra.mxu0 %v368
    %388 = vmatprep.subr.bf16.mxu0 0
    %389 = vmatpush1.bf16.msra.mxu0 %v367
    %390 = vmatprep.subr.bf16.mxu0 0
    %391 = vmatpush1.bf16.msra.mxu0 %v366
    %392 = vmatprep.subr.bf16.mxu0 0
    %393 = vmatpush1.bf16.msra.mxu0 %v365
    %394 = vmatprep.subr.bf16.mxu0 0
    %395 = vmatpush1.bf16.msra.mxu0 %v364
    %396 = vmatprep.subr.bf16.mxu0 0
    %397 = vmatpush2.bf16.msra.mxu0 0
    %398 = vmatprep.subr.bf16.mxu0 0
    %399 = vmatpush2.bf16.msra.mxu0 0
    %400 = vmatprep.subr.bf16.mxu0 0
    %401 = vmatpush2.bf16.msra.mxu0 0
    %402 = vmatprep.subr.bf16.mxu0 0
    %403 = vmatpush2.bf16.msra.mxu0 0
    %404 = vmatprep.subr.bf16.mxu0 0
    %405 = vmatpush2.bf16.msra.mxu0 0
    %406 = vmatprep.subr.bf16.mxu0 0
    %407 = vmatpush2.bf16.msra.mxu0 0
    %408 = vmatprep.subr.bf16.mxu0 0
    %409 = vmatpush2.bf16.msra.mxu0 0
    %410 = vmatprep.subr.bf16.mxu0 0
    %411 = vmatpush2.bf16.msra.mxu0 0
    %412 = vmatprep.mubr.bf16.mxu0 0
    %413 = vmatmul.mubr.bf16.gmra.mxu0 %v308
    %v414 = vpop.f32.mrf.mxu0
    %v415 = vadd.f32 %v330, %v414
    %v416 = vpop.f32.mrf.mxu0
    %v417 = vpop.f32.mrf.mxu0
    %v418 = vpop.f32.mrf.mxu0
    %419 = vdwg.mxu0
    %v420 = vmax.f32 %v415, 0.0
    %v421 = vpack.c.bf16 %v420, %v420
    %v422 = vld [vmem:[%s7] sm:$0xf]
    %v423 = vld [vmem:[%s7 + $0x4] sm:$0xf]
    %v424 = vld [vmem:[%s7 + $0x8] sm:$0xf]
    %v425 = vld [vmem:[%s7 + $0xc] sm:$0xf]
    %v426 = vld [vmem:[%s7 + $0x10] sm:$0xf]
    %v427 = vld [vmem:[%s7 + $0x14] sm:$0xf]
    %v428 = vld [vmem:[%s7 + $0x18] sm:$0xf]
    %v429 = vld [vmem:[%s7 + $0x1c] sm:$0xf]
    %v438 = vunpack.c.l.b16 %v422
    %v439 = vunpack.c.l.b16 %v423
    %v440 = vunpack.c.l.b16 %v424
    %v441 = vunpack.c.l.b16 %v425
    %v442 = vunpack.c.l.b16 %v426
    %v443 = vunpack.c.l.b16 %v427
    %v444 = vunpack.c.l.b16 %v428
    %v445 = vunpack.c.l.b16 %v429
    %v446 = vpack.c.b16 %v439, %v438
    %v447 = vpack.c.b16 %v441, %v440
    %v448 = vpack.c.b16 %v443, %v442
    %v449 = vpack.c.b16 %v445, %v444
    %vm454 = vcmask 523264
    %v456 = vsel %vm454, %v421, 0
    %458 = vmatprep.subr.bf16.mxu0 0
    %459 = vmatpush1.bf16.msra.mxu0 0
    %460 = vmatprep.subr.bf16.mxu0 0
    %461 = vmatpush1.bf16.msra.mxu0 0
    %462 = vmatprep.subr.bf16.mxu0 0
    %463 = vmatpush1.bf16.msra.mxu0 0
    %464 = vmatprep.subr.bf16.mxu0 0
    %465 = vmatpush1.bf16.msra.mxu0 0
    %466 = vmatprep.subr.bf16.mxu0 0
    %467 = vmatpush1.bf16.msra.mxu0 %v449
    %468 = vmatprep.subr.bf16.mxu0 0
    %469 = vmatpush1.bf16.msra.mxu0 %v448
    %470 = vmatprep.subr.bf16.mxu0 0
    %471 = vmatpush1.bf16.msra.mxu0 %v447
    %472 = vmatprep.subr.bf16.mxu0 0
    %473 = vmatpush1.bf16.msra.mxu0 %v446
    %474 = vmatprep.subr.bf16.mxu0 0
    %475 = vmatpush2.bf16.msra.mxu0 0
    %476 = vmatprep.subr.bf16.mxu0 0
    %477 = vmatpush2.bf16.msra.mxu0 0
    %478 = vmatprep.subr.bf16.mxu0 0
    %479 = vmatpush2.bf16.msra.mxu0 0
    %480 = vmatprep.subr.bf16.mxu0 0
    %481 = vmatpush2.bf16.msra.mxu0 0
    %482 = vmatprep.subr.bf16.mxu0 0
    %483 = vmatpush2.bf16.msra.mxu0 0
    %484 = vmatprep.subr.bf16.mxu0 0
    %485 = vmatpush2.bf16.msra.mxu0 0
    %486 = vmatprep.subr.bf16.mxu0 0
    %487 = vmatpush2.bf16.msra.mxu0 0
    %488 = vmatprep.subr.bf16.mxu0 0
    %489 = vmatpush2.bf16.msra.mxu0 0
    %490 = vmatprep.mubr.bf16.mxu0 0
    %491 = vmatmul.mubr.bf16.gmra.mxu0 %v456
    %v492 = vpop.f32.mrf.mxu0
    %v493 = vadd.f32 0.0, %v492
    %v494 = vpop.f32.mrf.mxu0
    %v495 = vpop.f32.mrf.mxu0
    %v496 = vpop.f32.mrf.mxu0
    %497 = vdwg.mxu0
    %vm498 = vcmask 60416
    %v499 = vsel %vm498, %v493, -inf
    %v500 = vrot.slane %v499, 4
    %v501 = vmax.f32 %v499, %v500
    %v502 = vrot.slane %v501, 2
    %v503 = vmax.f32 %v501, %v502
    %v504 = vrot.slane %v503, 1
    %v505 = vmax.f32 %v503, %v504
    %v506 = vsub.f32 %v493, %v505
    %v507 = vmul.f32 %v506, 1.442695
    %v508 = vpow.pop %v507
    %v509 = vsel %vm498, %v508, 0.0
    %v510 = vrot.slane %v509, 4
    %v511 = vadd.f32 %v509, %v510
    %v512 = vrot.slane %v511, 2
    %v513 = vadd.f32 %v511, %v512
    %v514 = vrot.slane %v513, 1
    %v515 = vadd.f32 %v513, %v514
    %v516 = vrcp.pop %v515
    %v517 = vmul.f32 %v516, 2.0
    %v518 = vmul.f32 %v508, %v517
    %519 = vst.msk [vmem:[#allocation5] sm:$0xf] %vm498, %v518
    // Predicated region
    $region38: #{tpu_custom_call.1} parent=1 // pred_check
      _
    $region39: #{tpu_custom_call.1} parent=1 // pred_check_branch
      %521 = sbr.rel (0) target = $region41
    $region40: #{tpu_custom_call.1} parent=1 // pred_region
      %s523 = ssub.s32 64, 64
      %524 = vsyncadd [#allocation4], %s523
      %s526 = sshll.u32 [#allocation5], 4
      %s527 = int_to_ptr.vmem [resolvable:$true] %s526
      %529 = dma.vmem_to_hbm [thread:$0]  %s527, 64, %s8, [#allocation4]
    $region41: #{tpu_custom_call.1} parent=1 // pred_fallthru
      _
    // Predicated region
    $region42: #{tpu_custom_call.1} parent=1 // pred_check
      _
    $region43: #{tpu_custom_call.1} parent=1 // pred_check_branch
      %531 = sbr.rel (0) target = $region45
    $region44: #{tpu_custom_call.1} parent=1 // pred_region
      %532 = dma.done [#allocation4], 64
    $region45: #{tpu_custom_call.1} parent=1 // pred_fallthru
      _
    %533 = vsyncpa [#allocation3], 1
    %534 = vsyncpa [#allocation4], 1

</llo_original>
